<compile_context>
chip_gen: v6e
topology: v6e:2x2x1
jax: 0.10.0
libtpu: 0.0.40
codegen_flags: <defaults>
</compile_context>

<pallas_src>
import functools

import numpy as np
import jax
import jax.numpy as jnp
from jax import lax  # noqa: F401  (kept for parity with other kernels)
from jax.experimental import pallas as pl
from jax.experimental.pallas import tpu as pltpu

# Plain Python float -> inlined literal in the jaxpr (NOT a captured constant).
_TWO_PI = float(2.0 * np.pi)


def _harmonic_sines(t, num):
    """[sin(1*t), ..., sin(num*t)] via the sine recurrence.

    Only 1 sin + 1 cos per coordinate hit the transcendental path; higher
    harmonics are VPU mul/sub:  sin(n*t) = 2*cos(t)*sin((n-1)*t) - sin((n-2)*t).
    (Error grows ~linearly in n in f32; fine for order <= ~10 at rtol 1e-4.)
    """
    s1 = jnp.sin(t)
    if num == 1:
        return [s1]
    two_c1 = 2.0 * jnp.cos(t)          # Python-float literal, stays f32
    sines = [s1, two_c1 * s1]
    for _ in range(3, num + 1):
        sines.append(two_c1 * sines[-1] - sines[-2])
    return sines


def _fourier_surface_kernel(c_ref, xyz_ref, out_ref, *, order, chunk_lanes):
    # c_ref:   SMEM (h**3,) f32 scalar-prefetch coefficients (zero harmonics dropped)
    # xyz_ref: VMEM (3, 8, L) f32   -- nb axis squeezed away by the BlockSpec
    # out_ref: VMEM (8, L) f32      -- sublane+lane dense output tile
    h = order - 1
    lanes = out_ref.shape[-1]
    n_chunks = lanes // chunk_lanes

    # Hoist the h^3 SMEM scalar loads (and their splats) out of the chunk loop
    # so they are not replayed per chunk (keeps scalar/misc slots off the
    # critical path).
    coeff = [c_ref[i] for i in range(h * h * h)]

    # Inner chunk loop over (8, chunk_lanes) slices of the block.  Fully
    # unrolled at trace time (2-5 chunks) -- equivalent to
    # lax.fori_loop(..., unroll=True) for this small static trip count -- so
    # the LLO scheduler sees everything, while the live vreg set stays at
    # ~3h + temps per chunk instead of 3h * (lanes/128) for a flat pass.
    for ci in range(n_chunks):
        sl = pl.ds(ci * chunk_lanes, chunk_lanes)
        x = xyz_ref[0, :, sl]          # direct per-coordinate tile-aligned loads
        y = xyz_ref[1, :, sl]
        z = xyz_ref[2, :, sl]

        sx = _harmonic_sines(_TWO_PI * x, h)
        sy = _harmonic_sines(_TWO_PI * y, h)
        sz = _harmonic_sines(_TWO_PI * z, h)

        # Nested scalar-broadcast contraction (unrolled at trace time):
        #   out = sum_a sx[a] * sum_b sy[b] * sum_c coeff[a,b,c] * sz[c]
        # MXU switch-over: only restructure into a (pts x h^2) @ (h^2 x h)
        # jnp.dot once h^2 >= ~64-128; below that the matmul zero-pads to the
        # 128/256 MXU dim and forces a lane-only point layout.  On v6e/v7x a
        # bf16 contraction (~2x VPU throughput) is a further option once VALU
        # is confirmed binding; kept f32 here so the same kernel is correct
        # on v5e (no bf16 VPU/EUP) and matches the f32 reference tightly.
        acc = None
        for a in range(h):
            t_a = None
            for b in range(h):
                u = None
                for c in range(h):
                    term = coeff[(a * h + b) * h + c] * sz[c]   # SMEM scalar bcast
                    u = term if u is None else u + term
                v = sy[b] * u
                t_a = v if t_a is None else t_a + v
            w = sx[a] * t_a
            acc = w if acc is None else acc + w
        out_ref[:, sl] = acc


def _pick_tile(n, tile_n):
    """Tile size: multiple of 1024, not huge for tiny inputs, and keeps
    nb >= 2 once N > 1024 so the parallel grid axis can shard across v7x's
    two TensorCores."""
    tile_n = max(1024, (int(tile_n) // 1024) * 1024)
    if n <= 1024:
        return 1024
    per_half = pl.cdiv(pl.cdiv(n, 2), 1024) * 1024    # ceil(n/2) rounded to 1024
    return min(tile_n, per_half)


def fourier_surface_cm(xyz_cm, coeffs, order, *, tile_n=8192):
    """Coordinate-major entry point: xyz_cm (3, N) f32, coeffs (order**3,) -> (N,).

    Avoids the (N,3)->(3,N) relayout HBM pass entirely; only a metadata-only
    reshape feeds the kernel.
    """
    n = xyz_cm.shape[1]
    if order < 2:
        # Every term contains sin(0) = 0.
        return jnp.zeros((n,), jnp.float32)

    tile_n = _pick_tile(n, tile_n)
    lanes = tile_n // 8
    n_pad = pl.cdiv(n, tile_n) * tile_n
    nb = n_pad // tile_n
    if lanes % 512 == 0:
        chunk_lanes = 512
    elif lanes % 256 == 0:
        chunk_lanes = 256
    else:
        chunk_lanes = 128

    xyz_cm = xyz_cm.astype(jnp.float32)
    if n_pad != n:
        xyz_cm = jnp.pad(xyz_cm, ((0, 0), (0, n_pad - n)))
    # Free (metadata-only) reshape of the contiguous (3, n_pad) buffer:
    # [d, b, r, c] holds coordinate d of point  b*tile_n + r*lanes + c.
    xyz_blk = xyz_cm.reshape(3, nb, 8, lanes)

    h = order - 1
    # Drop all i=0 / j=0 / k=0 terms (sin(0) == 0 contributes nothing).
    c_flat = (coeffs.astype(jnp.float32)
              .reshape(order, order, order)[1:, 1:, 1:]
              .reshape(h ** 3))

    kernel = functools.partial(_fourier_surface_kernel, order=order,
                               chunk_lanes=chunk_lanes)
    flops_per_pt = 2 * (h ** 3 + h ** 2 + h) + 6 * max(h - 1, 0) + 9
    cost = pl.CostEstimate(
        flops=n_pad * flops_per_pt,
        transcendentals=n_pad * (6 if h > 1 else 3),
        bytes_accessed=n_pad * 16 + h ** 3 * 4,
    )

    out = pl.pallas_call(
        kernel,
        out_shape=jax.ShapeDtypeStruct((nb * 8, lanes), jnp.float32),
        grid_spec=pltpu.PrefetchScalarGridSpec(
            num_scalar_prefetch=1,          # coefficients -> SMEM scalars
            grid=(nb,),
            in_specs=[
                # nb axis squeezed (None) -> kernel sees a (3, 8, lanes) tile.
                pl.BlockSpec((3, None, 8, lanes), lambda b, c: (0, b, 0, 0)),
            ],
            out_specs=pl.BlockSpec((8, lanes), lambda b, c: (b, 0)),
        ),
        compiler_params=pltpu.CompilerParams(
            dimension_semantics=("parallel",)),
        cost_estimate=cost,
    )(c_flat, xyz_blk)

    return out.reshape(n_pad)[:n]


def fourier_surface(xyz, coeffs, order, *, tile_n=8192):
    """Module-spec layout: xyz (N, 3) f32 -> (N,) f32."""
    # TODO(synk): callers that can supply coordinate-major (3, N) points should
    # call fourier_surface_cm() directly and skip this single transpose pass
    # (the only remaining host-side relayout).
    return fourier_surface_cm(jnp.transpose(xyz.astype(jnp.float32)),
                              coeffs, order, tile_n=tile_n)


def fourier_surface_ref(xyz, coeffs, order):
    """Plain-JAX mirror of the torch triple loop (same summation order)."""
    x, y, z = xyz[:, 0], xyz[:, 1], xyz[:, 2]
    out = jnp.zeros_like(x)
    for i in range(order):
        for j in range(order):
            for k in range(order):
                idx = i * order ** 2 + j * order + k
                c = coeffs[idx]
                out = out + c * (jnp.sin(2 * np.pi * i * x)
                                 * jnp.sin(2 * np.pi * j * y)
                                 * jnp.sin(2 * np.pi * k * z))
    return out


if __name__ == "__main__":
    key = jax.random.PRNGKey(0)

    # Case 1: the module's default-ish small config (single grid step).
    order = 3
    n_points = 256
    k_xyz, k_coef, key = jax.random.split(key, 3)
    xyz = jax.random.uniform(k_xyz, (n_points, 3), dtype=jnp.float32)
    coeffs = 0.1 * jax.random.normal(k_coef, (order ** 3,), dtype=jnp.float32)

    out = jax.block_until_ready(fourier_surface(xyz, coeffs, order))
    ref = fourier_surface_ref(xyz, coeffs, order)
    assert out.shape == (n_points,) and out.dtype == jnp.float32
    np.testing.assert_allclose(np.asarray(out), np.asarray(ref),
                               rtol=1e-4, atol=1e-5)

    # Case 2: padding (N not a tile multiple), 2 grid steps (nb>=2 clamp),
    # and a deeper sine recurrence (order 4).
    order2 = 4
    n_points2 = 2304
    k_xyz2, k_coef2, key = jax.random.split(key, 3)
    xyz2 = jax.random.uniform(k_xyz2, (n_points2, 3), dtype=jnp.float32)
    coeffs2 = 0.1 * jax.random.normal(k_coef2, (order2 ** 3,), dtype=jnp.float32)

    out2 = jax.block_until_ready(fourier_surface(xyz2, coeffs2, order2))
    ref2 = fourier_surface_ref(xyz2, coeffs2, order2)
    np.testing.assert_allclose(np.asarray(out2), np.asarray(ref2),
                               rtol=1e-4, atol=1e-5)

    # Case 3: larger N -> multi-chunk inner loop + coordinate-major fast-path
    # API (no transpose at all).
    order3 = 3
    n_points3 = 10000
    k_xyz3, k_coef3 = jax.random.split(key)
    xyz3_cm = jax.random.uniform(k_xyz3, (3, n_points3), dtype=jnp.float32)
    coeffs3 = 0.1 * jax.random.normal(k_coef3, (order3 ** 3,), dtype=jnp.float32)

    out3 = jax.block_until_ready(fourier_surface_cm(xyz3_cm, coeffs3, order3))
    ref3 = fourier_surface_ref(jnp.transpose(xyz3_cm), coeffs3, order3)
    np.testing.assert_allclose(np.asarray(out3), np.asarray(ref3),
                               rtol=1e-4, atol=1e-5)

    print("KERNEL_OK")
</pallas_src>

<mosaic_0001>
module attributes {stable_mosaic.version = 11 : i64} {
  func.func @_fourier_surface_kernel(%arg0: i32, %arg1: memref<8xf32, #tpu.memory_space<smem>>, %arg2: memref<3x1x8x128xf32, #tpu.memory_space<vmem>>, %arg3: memref<8x128xf32, #tpu.memory_space<vmem>>) attributes {dimension_semantics = [#tpu.dimension_semantics<parallel>], iteration_bounds = array<i64: 1>, scalar_prefetch = 1 : i64, scratch_operands = 0 : i64, tpu.core_type = #tpu.core_type<tc>, window_params = [{transform_indices = @transform_0, window_bounds = array<i64: 3, 1, 8, 128>}, {transform_indices = @transform_1, window_bounds = array<i64: 8, 128>}]} {
    %c0 = arith.constant 0 : index
    %0 = memref.load %arg1[%c0] : memref<8xf32, #tpu.memory_space<smem>>
    %c1 = arith.constant 1 : index
    %1 = memref.load %arg1[%c1] : memref<8xf32, #tpu.memory_space<smem>>
    %c2 = arith.constant 2 : index
    %2 = memref.load %arg1[%c2] : memref<8xf32, #tpu.memory_space<smem>>
    %c3 = arith.constant 3 : index
    %3 = memref.load %arg1[%c3] : memref<8xf32, #tpu.memory_space<smem>>
    %c4 = arith.constant 4 : index
    %4 = memref.load %arg1[%c4] : memref<8xf32, #tpu.memory_space<smem>>
    %c5 = arith.constant 5 : index
    %5 = memref.load %arg1[%c5] : memref<8xf32, #tpu.memory_space<smem>>
    %c6 = arith.constant 6 : index
    %6 = memref.load %arg1[%c6] : memref<8xf32, #tpu.memory_space<smem>>
    %c7 = arith.constant 7 : index
    %7 = memref.load %arg1[%c7] : memref<8xf32, #tpu.memory_space<smem>>
    %c0_0 = arith.constant 0 : index
    %c0_1 = arith.constant 0 : index
    %c0_2 = arith.constant 0 : index
    %c0_3 = arith.constant 0 : index
    %8 = vector.load %arg2[%c0_0, %c0_1, %c0_2, %c0_3] : memref<3x1x8x128xf32, #tpu.memory_space<vmem>>, vector<1x1x8x128xf32>
    %9 = vector.shape_cast %8 : vector<1x1x8x128xf32> to vector<8x128xf32>
    %c1_4 = arith.constant 1 : index
    %c0_5 = arith.constant 0 : index
    %c0_6 = arith.constant 0 : index
    %c0_7 = arith.constant 0 : index
    %10 = vector.load %arg2[%c1_4, %c0_5, %c0_6, %c0_7] : memref<3x1x8x128xf32, #tpu.memory_space<vmem>>, vector<1x1x8x128xf32>
    %11 = vector.shape_cast %10 : vector<1x1x8x128xf32> to vector<8x128xf32>
    %c2_8 = arith.constant 2 : index
    %c0_9 = arith.constant 0 : index
    %c0_10 = arith.constant 0 : index
    %c0_11 = arith.constant 0 : index
    %12 = vector.load %arg2[%c2_8, %c0_9, %c0_10, %c0_11] : memref<3x1x8x128xf32, #tpu.memory_space<vmem>>, vector<1x1x8x128xf32>
    %13 = vector.shape_cast %12 : vector<1x1x8x128xf32> to vector<8x128xf32>
    %cst = arith.constant 6.28318548 : f32
    %14 = vector.broadcast %cst : f32 to vector<8x128xf32>
    %15 = arith.mulf %14, %9 : vector<8x128xf32>
    %16 = math.sin %15 : vector<8x128xf32>
    %17 = math.cos %15 : vector<8x128xf32>
    %cst_12 = arith.constant 2.000000e+00 : f32
    %18 = vector.broadcast %cst_12 : f32 to vector<8x128xf32>
    %19 = arith.mulf %18, %17 : vector<8x128xf32>
    %20 = arith.mulf %19, %16 : vector<8x128xf32>
    %cst_13 = arith.constant 6.28318548 : f32
    %21 = vector.broadcast %cst_13 : f32 to vector<8x128xf32>
    %22 = arith.mulf %21, %11 : vector<8x128xf32>
    %23 = math.sin %22 : vector<8x128xf32>
    %24 = math.cos %22 : vector<8x128xf32>
    %cst_14 = arith.constant 2.000000e+00 : f32
    %25 = vector.broadcast %cst_14 : f32 to vector<8x128xf32>
    %26 = arith.mulf %25, %24 : vector<8x128xf32>
    %27 = arith.mulf %26, %23 : vector<8x128xf32>
    %cst_15 = arith.constant 6.28318548 : f32
    %28 = vector.broadcast %cst_15 : f32 to vector<8x128xf32>
    %29 = arith.mulf %28, %13 : vector<8x128xf32>
    %30 = math.sin %29 : vector<8x128xf32>
    %31 = math.cos %29 : vector<8x128xf32>
    %cst_16 = arith.constant 2.000000e+00 : f32
    %32 = vector.broadcast %cst_16 : f32 to vector<8x128xf32>
    %33 = arith.mulf %32, %31 : vector<8x128xf32>
    %34 = arith.mulf %33, %30 : vector<8x128xf32>
    %35 = vector.broadcast %0 : f32 to vector<8x128xf32>
    %36 = arith.mulf %35, %30 : vector<8x128xf32>
    %37 = vector.broadcast %1 : f32 to vector<8x128xf32>
    %38 = arith.mulf %37, %34 : vector<8x128xf32>
    %39 = arith.addf %36, %38 : vector<8x128xf32>
    %40 = arith.mulf %23, %39 : vector<8x128xf32>
    %41 = vector.broadcast %2 : f32 to vector<8x128xf32>
    %42 = arith.mulf %41, %30 : vector<8x128xf32>
    %43 = vector.broadcast %3 : f32 to vector<8x128xf32>
    %44 = arith.mulf %43, %34 : vector<8x128xf32>
    %45 = arith.addf %42, %44 : vector<8x128xf32>
    %46 = arith.mulf %27, %45 : vector<8x128xf32>
    %47 = arith.addf %40, %46 : vector<8x128xf32>
    %48 = arith.mulf %16, %47 : vector<8x128xf32>
    %49 = vector.broadcast %4 : f32 to vector<8x128xf32>
    %50 = arith.mulf %49, %30 : vector<8x128xf32>
    %51 = vector.broadcast %5 : f32 to vector<8x128xf32>
    %52 = arith.mulf %51, %34 : vector<8x128xf32>
    %53 = arith.addf %50, %52 : vector<8x128xf32>
    %54 = arith.mulf %23, %53 : vector<8x128xf32>
    %55 = vector.broadcast %6 : f32 to vector<8x128xf32>
    %56 = arith.mulf %55, %30 : vector<8x128xf32>
    %57 = vector.broadcast %7 : f32 to vector<8x128xf32>
    %58 = arith.mulf %57, %34 : vector<8x128xf32>
    %59 = arith.addf %56, %58 : vector<8x128xf32>
    %60 = arith.mulf %27, %59 : vector<8x128xf32>
    %61 = arith.addf %54, %60 : vector<8x128xf32>
    %62 = arith.mulf %20, %61 : vector<8x128xf32>
    %63 = arith.addf %48, %62 : vector<8x128xf32>
    %c0_17 = arith.constant 0 : index
    %c0_18 = arith.constant 0 : index
    %64 = vector.load %arg3[%c0_17, %c0_18] : memref<8x128xf32, #tpu.memory_space<vmem>>, vector<8x128xf32>
    tpu.vector_store %arg3[%c0_17, %c0_18], %63 {strides = array<i32>} : memref<8x128xf32, #tpu.memory_space<vmem>>, vector<8x128xf32>,
    return
  }
  func.func @transform_0(%arg0: i32, %arg1: memref<8xf32, #tpu.memory_space<smem>>) -> (i32, i32, i32, i32) {
    %c0_i32 = arith.constant 0 : i32
    %c0_i32_0 = arith.constant 0 : i32
    %c0_i32_1 = arith.constant 0 : i32
    %c0_i32_2 = arith.constant 0 : i32
    return %c0_i32, %arg0, %c0_i32_0, %c0_i32_1 : i32, i32, i32, i32
  }
  func.func @transform_1(%arg0: i32, %arg1: memref<8xf32, #tpu.memory_space<smem>>) -> (i32, i32) {
    %c0_i32 = arith.constant 0 : i32
    %c0_i32_0 = arith.constant 0 : i32
    return %arg0, %c0_i32 : i32, i32
  }
}

</mosaic_0001>

<llo_original>
// kernel: tpu_custom_call.1
$region0: #{tpu_custom_call.1}
  #allocation0 [shape = 'u32[]', space=smem, size = 0x4, offset = 0x4, fixed_abs, tag = 'smem constant byte address 0x4 - core index']
  #allocation1 [shape = 'u32[144,128]{1,0:T(1,128)}', space=vmem, size = 0x12000, scoped, tag = 'internal scratch']
  #allocation2 [shape = 's32[1]{0}', space=sflag, size = 0x4, scoped, tag = 'scoped memory for tpu_custom_call.1']
  #allocation3 [shape = 'u8[512]{0}', space=smem, size = 0x200, scoped, tag = 'prefetched SMEM operand 0']
  %s0 = inlined_call_operand.hbm [shape: f32[8], index: 0, kind: input, shape index: {}]
  %s1 = inlined_call_operand.hbm [shape: f32[3,1,8,128], index: 1, kind: input, shape index: {}]
  %s2 = inlined_call_operand.hbm [shape: f32[8,128], index: 2, kind: output, shape index: {}]
  %s3 = sld [smem:[#allocation0]]
  $region18: #{tpu_custom_call.1} parent=0
    _
  %s5 = ssub.s32 1, %s3
  %s6 = scalar_select 0, %s5, %s3
  %8 = dma.hbm_to_smem %s0, 16, [#allocation3], [#allocation2]
  %9 = dma.done [#allocation2], 16
  %10 = sfence
  $region1: #{tpu_custom_call.1} parent=0
    #allocation4 [shape = 'u8[12288]{0}', space=vmem, size = 0x3000, scoped, tag = 'input window, operand 1, single buffered']
    #allocation5 [shape = 's32[1]{0}', space=sflag, size = 0x4, scoped, tag = 'scoped memory for tpu_custom_call.1']
    #allocation6 [shape = 's32[1]{0}', space=sflag, size = 0x4, scoped, tag = 'scoped memory for tpu_custom_call.1']
    #allocation7 [shape = 'u8[4096]{0}', space=vmem, size = 0x1000, scoped, tag = 'output window, operand 0, single buffered']
    %11 = vsyncpa [#allocation5], 0
    %12 = vsyncpa [#allocation6], 0
    // Predicated region
    $region2: #{tpu_custom_call.1} parent=1 // pred_check
      _
    $region3: #{tpu_custom_call.1} parent=1 // pred_check_branch
      %14 = sbr.rel (0) target = $region5
    $region4: #{tpu_custom_call.1} parent=1 // pred_region
      %s16 = ssub.s32 384, 384
      %17 = vsyncadd [#allocation5], %s16
      %s18 = sshll.u32 [#allocation4], 4
      %s19 = int_to_ptr.vmem [resolvable:$true] %s18
      %24 = dma.hbm_to_vmem [thread:$0]  %s1, 384, %s19, [#allocation5], 128, 128, 8
    $region5: #{tpu_custom_call.1} parent=1 // pred_fallthru
      _
    // Predicated region
    $region6: #{tpu_custom_call.1} parent=1 // pred_check
      _
    $region7: #{tpu_custom_call.1} parent=1 // pred_check_branch
      %26 = sbr.rel (0) target = $region9
    $region8: #{tpu_custom_call.1} parent=1 // pred_region
      %27 = dma.done [#allocation5], 384
    $region9: #{tpu_custom_call.1} parent=1 // pred_fallthru
      _
    %s28 = sld [smem:[#allocation3]]
    %s29 = sld [smem:[#allocation3 + $0x1]]
    %s30 = sld [smem:[#allocation3 + $0x2]]
    %s31 = sld [smem:[#allocation3 + $0x3]]
    %s32 = sld [smem:[#allocation3 + $0x4]]
    %s33 = sld [smem:[#allocation3 + $0x5]]
    %s34 = sld [smem:[#allocation3 + $0x6]]
    %s35 = sld [smem:[#allocation3 + $0x7]]
    %v36 = vld [vmem:[#allocation4] sm:$0xff]
    %s37 = scalar_lea.vmem [#allocation4], 8
    %v38 = vld [vmem:[%s37] sm:$0xff]
    %s39 = scalar_lea.vmem [#allocation4], 16
    %v40 = vld [vmem:[%s39] sm:$0xff]
    %v41 = vmul.f32 %v36, 6.2831855
    %v42 = vand.u32 2147483647, %v41
    %vm43 = vcmp.le.f32.partialorder %v42, 0.7853982
    %vm44 = vcmp.lt.s32.totalorder %v41, 0
    %v45 = vand.u32 %v41, 2139095040
    %v46 = vshrl.u32 %v45, 23
    %v47 = vsub.s32 %v46, 127
    %v48 = vand.u32 2147483647, %v41
    %v49 = vand.u32 %v48, 8388607
    %v50 = vor.u32 %v49, 8388608
    %v51 = vsub.s32 0, %v50
    %v52 = vadd.s32 %v47, 1
    %vm53 = vcmp.gt.s32.totalorder %v52, 0
    %v54 = vsel %vm53, %v52, 0
    %v55 = vshrl.u32 %v54, 5
    %v56 = vand.u32 %v54, 31
    %v57 = vsub.s32 32, %v56
    %v58 = vshrl.u32 683565275, %v57
    %v59 = vshll.u32 683565275, %v56
    %v60 = vshrl.u32 2475754826, %v57
    %v61 = vor.u32 %v59, %v60
    %v62 = vshll.u32 2475754826, %v56
    %v63 = vshrl.u32 2131351028, %v57
    %v64 = vor.u32 %v62, %v63
    %v65 = vshll.u32 2131351028, %v56
    %v66 = vshrl.u32 2102212464, %v57
    %v67 = vor.u32 %v65, %v66
    %v68 = vshll.u32 2102212464, %v56
    %v69 = vshrl.u32 920167782, %v57
    %v70 = vor.u32 %v68, %v69
    %v71 = vshll.u32 920167782, %v56
    %v72 = vshrl.u32 1326507024, %v57
    %v73 = vor.u32 %v71, %v72
    %vm74 = vcmp.lt.s32.totalorder %v55, 1
    %vm75 = vcmp.lt.s32.totalorder %v55, 2
    %vm76 = vcmp.lt.s32.totalorder %v55, 3
    %vm77 = vcmp.lt.s32.totalorder %v55, 4
    %v78 = vsel %vm74, %v58, %v61
    %v79 = vsel %vm77, %v67, 2102212464
    %v80 = vsel %vm76, %v64, %v79
    %v81 = vsel %vm75, %v78, %v80
    %v82 = vsel %vm74, %v61, %v64
    %v83 = vsel %vm77, %v70, 920167782
    %v84 = vsel %vm76, %v67, %v83
    %v85 = vsel %vm75, %v82, %v84
    %v86 = vsel %vm74, %v64, %v67
    %v87 = vsel %vm77, %v73, 1326507024
    %v88 = vsel %vm76, %v70, %v87
    %v89 = vsel %vm75, %v86, %v88
    %v90 = vshll.u32 %v50, 8
    %v91 = vmul.u32.u64.compose %v90, %v89
    %v92 = vextract.low.u32 %v91
    %v93 = vextract.high.u32 %v91
    %v94 = vmul.u32.u64.compose %v90, %v85
    %v95 = vextract.low.u32 %v94
    %v96 = vextract.high.u32 %v94
    %v97 = vmul.u32 %v90, %v81
    %v98 = vadd.s32 %v93, %v95
    %vm99 = vc.u32 %v93, %v95
    %v100 = vadd.s32 %v96, 1
    %v101 = vsel %vm99, %v100, %v96
    %v102 = vadd.s32 %v97, %v101
    %v103 = vadd.s32 %v102, 536870912
    %v104 = vshrl.u32 %v103, 30
    %v105 = vshll.u32 %v104, 30
    %v106 = vsub.s32 %v102, %v105
    %vm107 = vcmp.lt.s32.totalorder %v106, 0
    %v108 = vsub.s32 0, %v106
    %v109 = vsel %vm107, %v108, %v106
    %v110 = vclz %v109
    %v111 = vsub.s32 %v110, 2
    %vm112 = vcmp.gt.s32.totalorder 0, %v111
    %v113 = vsel %vm112, 0, %v111
    %v114 = vsub.s32 32, %v113
    %v115 = vshll.u32 %v106, %v113
    %v116 = vshrl.u32 %v98, %v114
    %v117 = vor.u32 %v115, %v116
    %v118 = vsub.s32 4294967266, %v113
    %v119 = vadd.s32 %v118, 127
    %v120 = vshll.u32 %v119, 23
    %v121 = vor.u32 4788187, %v120
    %v122 = vand.u32 2147483647, %v121
    %v124 = vcvt.s32.f32 %v117
    %v125 = vmul.f32 %v124, %v122
    %v126 = vxor.u32 %v125, 2147483648
    %v127 = vsel %vm44, %v126, %v125
    %v128 = vsub.s32 4, %v104
    %v129 = vsel %vm44, %v128, %v104
    %v130 = vsel %vm43, %v41, %v127
    %v131 = vsel %vm43, 0, %v129
    %v132 = vcosq.f32.pop %v130
    %v133 = vsinq.f32.pop %v130
    %vm134 = vweird.f32 %v41
    %v135 = vadd.s32 %v131, 3
    %v136 = vand.u32 %v135, 3
    %vm137 = vcmp.lt.s32.totalorder %v136, 2
    %vm138 = vcmp.eq.s32.totalorder %v136, 0
    %v139 = vxor.u32 %v133, 2147483648
    %v140 = vsel %vm138, %v132, %v139
    %vm141 = vcmp.eq.s32.totalorder %v136, 2
    %v142 = vxor.u32 %v132, 2147483648
    %v143 = vsel %vm141, %v142, %v133
    %v144 = vsel %vm137, %v140, %v143
    %v145 = vsel %vm134, nan, %v144
    %v146 = vand.u32 2147483647, %v41
    %vm147 = vcmp.le.f32.partialorder %v146, 0.7853982
    %vm148 = vcmp.lt.s32.totalorder %v41, 0
    %v149 = vand.u32 %v41, 2139095040
    %v150 = vshrl.u32 %v149, 23
    %v151 = vsub.s32 %v150, 127
    %v152 = vand.u32 2147483647, %v41
    %v153 = vand.u32 %v152, 8388607
    %v154 = vor.u32 %v153, 8388608
    %v155 = vsub.s32 0, %v154
    %v156 = vadd.s32 %v151, 1
    %vm157 = vcmp.gt.s32.totalorder %v156, 0
    %v158 = vsel %vm157, %v156, 0
    %v159 = vshrl.u32 %v158, 5
    %v160 = vand.u32 %v158, 31
    %v161 = vsub.s32 32, %v160
    %v162 = vshrl.u32 683565275, %v161
    %v163 = vshll.u32 683565275, %v160
    %v164 = vshrl.u32 2475754826, %v161
    %v165 = vor.u32 %v163, %v164
    %v166 = vshll.u32 2475754826, %v160
    %v167 = vshrl.u32 2131351028, %v161
    %v168 = vor.u32 %v166, %v167
    %v169 = vshll.u32 2131351028, %v160
    %v170 = vshrl.u32 2102212464, %v161
    %v171 = vor.u32 %v169, %v170
    %v172 = vshll.u32 2102212464, %v160
    %v173 = vshrl.u32 920167782, %v161
    %v174 = vor.u32 %v172, %v173
    %v175 = vshll.u32 920167782, %v160
    %v176 = vshrl.u32 1326507024, %v161
    %v177 = vor.u32 %v175, %v176
    %vm178 = vcmp.lt.s32.totalorder %v159, 1
    %vm179 = vcmp.lt.s32.totalorder %v159, 2
    %vm180 = vcmp.lt.s32.totalorder %v159, 3
    %vm181 = vcmp.lt.s32.totalorder %v159, 4
    %v182 = vsel %vm178, %v162, %v165
    %v183 = vsel %vm181, %v171, 2102212464
    %v184 = vsel %vm180, %v168, %v183
    %v185 = vsel %vm179, %v182, %v184
    %v186 = vsel %vm178, %v165, %v168
    %v187 = vsel %vm181, %v174, 920167782
    %v188 = vsel %vm180, %v171, %v187
    %v189 = vsel %vm179, %v186, %v188
    %v190 = vsel %vm178, %v168, %v171
    %v191 = vsel %vm181, %v177, 1326507024
    %v192 = vsel %vm180, %v174, %v191
    %v193 = vsel %vm179, %v190, %v192
    %v194 = vshll.u32 %v154, 8
    %v195 = vmul.u32.u64.compose %v194, %v193
    %v196 = vextract.low.u32 %v195
    %v197 = vextract.high.u32 %v195
    %v198 = vmul.u32.u64.compose %v194, %v189
    %v199 = vextract.low.u32 %v198
    %v200 = vextract.high.u32 %v198
    %v201 = vmul.u32 %v194, %v185
    %v202 = vadd.s32 %v197, %v199
    %vm203 = vc.u32 %v197, %v199
    %v204 = vadd.s32 %v200, 1
    %v205 = vsel %vm203, %v204, %v200
    %v206 = vadd.s32 %v201, %v205
    %v207 = vadd.s32 %v206, 536870912
    %v208 = vshrl.u32 %v207, 30
    %v209 = vshll.u32 %v208, 30
    %v210 = vsub.s32 %v206, %v209
    %vm211 = vcmp.lt.s32.totalorder %v210, 0
    %v212 = vsub.s32 0, %v210
    %v213 = vsel %vm211, %v212, %v210
    %v214 = vclz %v213
    %v215 = vsub.s32 %v214, 2
    %vm216 = vcmp.gt.s32.totalorder 0, %v215
    %v217 = vsel %vm216, 0, %v215
    %v218 = vsub.s32 32, %v217
    %v219 = vshll.u32 %v210, %v217
    %v220 = vshrl.u32 %v202, %v218
    %v221 = vor.u32 %v219, %v220
    %v222 = vsub.s32 4294967266, %v217
    %v223 = vadd.s32 %v222, 127
    %v224 = vshll.u32 %v223, 23
    %v225 = vor.u32 4788187, %v224
    %v226 = vand.u32 2147483647, %v225
    %v228 = vcvt.s32.f32 %v221
    %v229 = vmul.f32 %v228, %v226
    %v230 = vxor.u32 %v229, 2147483648
    %v231 = vsel %vm148, %v230, %v229
    %v232 = vsub.s32 4, %v208
    %v233 = vsel %vm148, %v232, %v208
    %v234 = vsel %vm147, %v41, %v231
    %v235 = vsel %vm147, 0, %v233
    %v236 = vcosq.f32.pop %v234
    %v237 = vsinq.f32.pop %v234
    %vm238 = vweird.f32 %v41
    %v239 = vand.u32 %v235, 3
    %vm240 = vcmp.lt.s32.totalorder %v239, 2
    %vm241 = vcmp.eq.s32.totalorder %v239, 0
    %v242 = vxor.u32 %v237, 2147483648
    %v243 = vsel %vm241, %v236, %v242
    %vm244 = vcmp.eq.s32.totalorder %v239, 2
    %v245 = vxor.u32 %v236, 2147483648
    %v246 = vsel %vm244, %v245, %v237
    %v247 = vsel %vm240, %v243, %v246
    %v248 = vsel %vm238, nan, %v247
    %v249 = vmul.f32 %v248, 2.0
    %v250 = vmul.f32 %v249, %v145
    %v251 = vmul.f32 %v38, 6.2831855
    %v252 = vand.u32 2147483647, %v251
    %vm253 = vcmp.le.f32.partialorder %v252, 0.7853982
    %vm254 = vcmp.lt.s32.totalorder %v251, 0
    %v255 = vand.u32 %v251, 2139095040
    %v256 = vshrl.u32 %v255, 23
    %v257 = vsub.s32 %v256, 127
    %v258 = vand.u32 2147483647, %v251
    %v259 = vand.u32 %v258, 8388607
    %v260 = vor.u32 %v259, 8388608
    %v261 = vsub.s32 0, %v260
    %v262 = vadd.s32 %v257, 1
    %vm263 = vcmp.gt.s32.totalorder %v262, 0
    %v264 = vsel %vm263, %v262, 0
    %v265 = vshrl.u32 %v264, 5
    %v266 = vand.u32 %v264, 31
    %v267 = vsub.s32 32, %v266
    %v268 = vshrl.u32 683565275, %v267
    %v269 = vshll.u32 683565275, %v266
    %v270 = vshrl.u32 2475754826, %v267
    %v271 = vor.u32 %v269, %v270
    %v272 = vshll.u32 2475754826, %v266
    %v273 = vshrl.u32 2131351028, %v267
    %v274 = vor.u32 %v272, %v273
    %v275 = vshll.u32 2131351028, %v266
    %v276 = vshrl.u32 2102212464, %v267
    %v277 = vor.u32 %v275, %v276
    %v278 = vshll.u32 2102212464, %v266
    %v279 = vshrl.u32 920167782, %v267
    %v280 = vor.u32 %v278, %v279
    %v281 = vshll.u32 920167782, %v266
    %v282 = vshrl.u32 1326507024, %v267
    %v283 = vor.u32 %v281, %v282
    %vm284 = vcmp.lt.s32.totalorder %v265, 1
    %vm285 = vcmp.lt.s32.totalorder %v265, 2
    %vm286 = vcmp.lt.s32.totalorder %v265, 3
    %vm287 = vcmp.lt.s32.totalorder %v265, 4
    %v288 = vsel %vm284, %v268, %v271
    %v289 = vsel %vm287, %v277, 2102212464
    %v290 = vsel %vm286, %v274, %v289
    %v291 = vsel %vm285, %v288, %v290
    %v292 = vsel %vm284, %v271, %v274
    %v293 = vsel %vm287, %v280, 920167782
    %v294 = vsel %vm286, %v277, %v293
    %v295 = vsel %vm285, %v292, %v294
    %v296 = vsel %vm284, %v274, %v277
    %v297 = vsel %vm287, %v283, 1326507024
    %v298 = vsel %vm286, %v280, %v297
    %v299 = vsel %vm285, %v296, %v298
    %v300 = vshll.u32 %v260, 8
    %v301 = vmul.u32.u64.compose %v300, %v299
    %v302 = vextract.low.u32 %v301
    %v303 = vextract.high.u32 %v301
    %v304 = vmul.u32.u64.compose %v300, %v295
    %v305 = vextract.low.u32 %v304
    %v306 = vextract.high.u32 %v304
    %v307 = vmul.u32 %v300, %v291
    %v308 = vadd.s32 %v303, %v305
    %vm309 = vc.u32 %v303, %v305
    %v310 = vadd.s32 %v306, 1
    %v311 = vsel %vm309, %v310, %v306
    %v312 = vadd.s32 %v307, %v311
    %v313 = vadd.s32 %v312, 536870912
    %v314 = vshrl.u32 %v313, 30
    %v315 = vshll.u32 %v314, 30
    %v316 = vsub.s32 %v312, %v315
    %vm317 = vcmp.lt.s32.totalorder %v316, 0
    %v318 = vsub.s32 0, %v316
    %v319 = vsel %vm317, %v318, %v316
    %v320 = vclz %v319
    %v321 = vsub.s32 %v320, 2
    %vm322 = vcmp.gt.s32.totalorder 0, %v321
    %v323 = vsel %vm322, 0, %v321
    %v324 = vsub.s32 32, %v323
    %v325 = vshll.u32 %v316, %v323
    %v326 = vshrl.u32 %v308, %v324
    %v327 = vor.u32 %v325, %v326
    %v328 = vsub.s32 4294967266, %v323
    %v329 = vadd.s32 %v328, 127
    %v330 = vshll.u32 %v329, 23
    %v331 = vor.u32 4788187, %v330
    %v332 = vand.u32 2147483647, %v331
    %v334 = vcvt.s32.f32 %v327
    %v335 = vmul.f32 %v334, %v332
    %v336 = vxor.u32 %v335, 2147483648
    %v337 = vsel %vm254, %v336, %v335
    %v338 = vsub.s32 4, %v314
    %v339 = vsel %vm254, %v338, %v314
    %v340 = vsel %vm253, %v251, %v337
    %v341 = vsel %vm253, 0, %v339
    %v342 = vcosq.f32.pop %v340
    %v343 = vsinq.f32.pop %v340
    %vm344 = vweird.f32 %v251
    %v345 = vadd.s32 %v341, 3
    %v346 = vand.u32 %v345, 3
    %vm347 = vcmp.lt.s32.totalorder %v346, 2
    %vm348 = vcmp.eq.s32.totalorder %v346, 0
    %v349 = vxor.u32 %v343, 2147483648
    %v350 = vsel %vm348, %v342, %v349
    %vm351 = vcmp.eq.s32.totalorder %v346, 2
    %v352 = vxor.u32 %v342, 2147483648
    %v353 = vsel %vm351, %v352, %v343
    %v354 = vsel %vm347, %v350, %v353
    %v355 = vsel %vm344, nan, %v354
    %v356 = vand.u32 2147483647, %v251
    %vm357 = vcmp.le.f32.partialorder %v356, 0.7853982
    %vm358 = vcmp.lt.s32.totalorder %v251, 0
    %v359 = vand.u32 %v251, 2139095040
    %v360 = vshrl.u32 %v359, 23
    %v361 = vsub.s32 %v360, 127
    %v362 = vand.u32 2147483647, %v251
    %v363 = vand.u32 %v362, 8388607
    %v364 = vor.u32 %v363, 8388608
    %v365 = vsub.s32 0, %v364
    %v366 = vadd.s32 %v361, 1
    %vm367 = vcmp.gt.s32.totalorder %v366, 0
    %v368 = vsel %vm367, %v366, 0
    %v369 = vshrl.u32 %v368, 5
    %v370 = vand.u32 %v368, 31
    %v371 = vsub.s32 32, %v370
    %v372 = vshrl.u32 683565275, %v371
    %v373 = vshll.u32 683565275, %v370
    %v374 = vshrl.u32 2475754826, %v371
    %v375 = vor.u32 %v373, %v374
    %v376 = vshll.u32 2475754826, %v370
    %v377 = vshrl.u32 2131351028, %v371
    %v378 = vor.u32 %v376, %v377
    %v379 = vshll.u32 2131351028, %v370
    %v380 = vshrl.u32 2102212464, %v371
    %v381 = vor.u32 %v379, %v380
    %v382 = vshll.u32 2102212464, %v370
    %v383 = vshrl.u32 920167782, %v371
    %v384 = vor.u32 %v382, %v383
    %v385 = vshll.u32 920167782, %v370
    %v386 = vshrl.u32 1326507024, %v371
    %v387 = vor.u32 %v385, %v386
    %vm388 = vcmp.lt.s32.totalorder %v369, 1
    %vm389 = vcmp.lt.s32.totalorder %v369, 2
    %vm390 = vcmp.lt.s32.totalorder %v369, 3
    %vm391 = vcmp.lt.s32.totalorder %v369, 4
    %v392 = vsel %vm388, %v372, %v375
    %v393 = vsel %vm391, %v381, 2102212464
    %v394 = vsel %vm390, %v378, %v393
    %v395 = vsel %vm389, %v392, %v394
    %v396 = vsel %vm388, %v375, %v378
    %v397 = vsel %vm391, %v384, 920167782
    %v398 = vsel %vm390, %v381, %v397
    %v399 = vsel %vm389, %v396, %v398
    %v400 = vsel %vm388, %v378, %v381
    %v401 = vsel %vm391, %v387, 1326507024
    %v402 = vsel %vm390, %v384, %v401
    %v403 = vsel %vm389, %v400, %v402
    %v404 = vshll.u32 %v364, 8
    %v405 = vmul.u32.u64.compose %v404, %v403
    %v406 = vextract.low.u32 %v405
    %v407 = vextract.high.u32 %v405
    %v408 = vmul.u32.u64.compose %v404, %v399
    %v409 = vextract.low.u32 %v408
    %v410 = vextract.high.u32 %v408
    %v411 = vmul.u32 %v404, %v395
    %v412 = vadd.s32 %v407, %v409
    %vm413 = vc.u32 %v407, %v409
    %v414 = vadd.s32 %v410, 1
    %v415 = vsel %vm413, %v414, %v410
    %v416 = vadd.s32 %v411, %v415
    %v417 = vadd.s32 %v416, 536870912
    %v418 = vshrl.u32 %v417, 30
    %v419 = vshll.u32 %v418, 30
    %v420 = vsub.s32 %v416, %v419
    %vm421 = vcmp.lt.s32.totalorder %v420, 0
    %v422 = vsub.s32 0, %v420
    %v423 = vsel %vm421, %v422, %v420
    %v424 = vclz %v423
    %v425 = vsub.s32 %v424, 2
    %vm426 = vcmp.gt.s32.totalorder 0, %v425
    %v427 = vsel %vm426, 0, %v425
    %v428 = vsub.s32 32, %v427
    %v429 = vshll.u32 %v420, %v427
    %v430 = vshrl.u32 %v412, %v428
    %v431 = vor.u32 %v429, %v430
    %v432 = vsub.s32 4294967266, %v427
    %v433 = vadd.s32 %v432, 127
    %v434 = vshll.u32 %v433, 23
    %v435 = vor.u32 4788187, %v434
    %v436 = vand.u32 2147483647, %v435
    %v438 = vcvt.s32.f32 %v431
    %v439 = vmul.f32 %v438, %v436
    %v440 = vxor.u32 %v439, 2147483648
    %v441 = vsel %vm358, %v440, %v439
    %v442 = vsub.s32 4, %v418
    %v443 = vsel %vm358, %v442, %v418
    %v444 = vsel %vm357, %v251, %v441
    %v445 = vsel %vm357, 0, %v443
    %v446 = vcosq.f32.pop %v444
    %v447 = vsinq.f32.pop %v444
    %vm448 = vweird.f32 %v251
    %v449 = vand.u32 %v445, 3
    %vm450 = vcmp.lt.s32.totalorder %v449, 2
    %vm451 = vcmp.eq.s32.totalorder %v449, 0
    %v452 = vxor.u32 %v447, 2147483648
    %v453 = vsel %vm451, %v446, %v452
    %vm454 = vcmp.eq.s32.totalorder %v449, 2
    %v455 = vxor.u32 %v446, 2147483648
    %v456 = vsel %vm454, %v455, %v447
    %v457 = vsel %vm450, %v453, %v456
    %v458 = vsel %vm448, nan, %v457
    %v459 = vmul.f32 %v458, 2.0
    %v460 = vmul.f32 %v459, %v355
    %v461 = vmul.f32 %v40, 6.2831855
    %v462 = vand.u32 2147483647, %v461
    %vm463 = vcmp.le.f32.partialorder %v462, 0.7853982
    %vm464 = vcmp.lt.s32.totalorder %v461, 0
    %v465 = vand.u32 %v461, 2139095040
    %v466 = vshrl.u32 %v465, 23
    %v467 = vsub.s32 %v466, 127
    %v468 = vand.u32 2147483647, %v461
    %v469 = vand.u32 %v468, 8388607
    %v470 = vor.u32 %v469, 8388608
    %v471 = vsub.s32 0, %v470
    %v472 = vadd.s32 %v467, 1
    %vm473 = vcmp.gt.s32.totalorder %v472, 0
    %v474 = vsel %vm473, %v472, 0
    %v475 = vshrl.u32 %v474, 5
    %v476 = vand.u32 %v474, 31
    %v477 = vsub.s32 32, %v476
    %v478 = vshrl.u32 683565275, %v477
    %v479 = vshll.u32 683565275, %v476
    %v480 = vshrl.u32 2475754826, %v477
    %v481 = vor.u32 %v479, %v480
    %v482 = vshll.u32 2475754826, %v476
    %v483 = vshrl.u32 2131351028, %v477
    %v484 = vor.u32 %v482, %v483
    %v485 = vshll.u32 2131351028, %v476
    %v486 = vshrl.u32 2102212464, %v477
    %v487 = vor.u32 %v485, %v486
    %v488 = vshll.u32 2102212464, %v476
    %v489 = vshrl.u32 920167782, %v477
    %v490 = vor.u32 %v488, %v489
    %v491 = vshll.u32 920167782, %v476
    %v492 = vshrl.u32 1326507024, %v477
    %v493 = vor.u32 %v491, %v492
    %vm494 = vcmp.lt.s32.totalorder %v475, 1
    %vm495 = vcmp.lt.s32.totalorder %v475, 2
    %vm496 = vcmp.lt.s32.totalorder %v475, 3
    %vm497 = vcmp.lt.s32.totalorder %v475, 4
    %v498 = vsel %vm494, %v478, %v481
    %v499 = vsel %vm497, %v487, 2102212464
    %v500 = vsel %vm496, %v484, %v499
    %v501 = vsel %vm495, %v498, %v500
    %v502 = vsel %vm494, %v481, %v484
    %v503 = vsel %vm497, %v490, 920167782
    %v504 = vsel %vm496, %v487, %v503
    %v505 = vsel %vm495, %v502, %v504
    %v506 = vsel %vm494, %v484, %v487
    %v507 = vsel %vm497, %v493, 1326507024
    %v508 = vsel %vm496, %v490, %v507
    %v509 = vsel %vm495, %v506, %v508
    %v510 = vshll.u32 %v470, 8
    %v511 = vmul.u32.u64.compose %v510, %v509
    %v512 = vextract.low.u32 %v511
    %v513 = vextract.high.u32 %v511
    %v514 = vmul.u32.u64.compose %v510, %v505
    %v515 = vextract.low.u32 %v514
    %v516 = vextract.high.u32 %v514
    %v517 = vmul.u32 %v510, %v501
    %v518 = vadd.s32 %v513, %v515
    %vm519 = vc.u32 %v513, %v515
    %v520 = vadd.s32 %v516, 1
    %v521 = vsel %vm519, %v520, %v516
    %v522 = vadd.s32 %v517, %v521
    %v523 = vadd.s32 %v522, 536870912
    %v524 = vshrl.u32 %v523, 30
    %v525 = vshll.u32 %v524, 30
    %v526 = vsub.s32 %v522, %v525
    %vm527 = vcmp.lt.s32.totalorder %v526, 0
    %v528 = vsub.s32 0, %v526
    %v529 = vsel %vm527, %v528, %v526
    %v530 = vclz %v529
    %v531 = vsub.s32 %v530, 2
    %vm532 = vcmp.gt.s32.totalorder 0, %v531
    %v533 = vsel %vm532, 0, %v531
    %v534 = vsub.s32 32, %v533
    %v535 = vshll.u32 %v526, %v533
    %v536 = vshrl.u32 %v518, %v534
    %v537 = vor.u32 %v535, %v536
    %v538 = vsub.s32 4294967266, %v533
    %v539 = vadd.s32 %v538, 127
    %v540 = vshll.u32 %v539, 23
    %v541 = vor.u32 4788187, %v540
    %v542 = vand.u32 2147483647, %v541
    %v544 = vcvt.s32.f32 %v537
    %v545 = vmul.f32 %v544, %v542
    %v546 = vxor.u32 %v545, 2147483648
    %v547 = vsel %vm464, %v546, %v545
    %v548 = vsub.s32 4, %v524
    %v549 = vsel %vm464, %v548, %v524
    %v550 = vsel %vm463, %v461, %v547
    %v551 = vsel %vm463, 0, %v549
    %v552 = vcosq.f32.pop %v550
    %v553 = vsinq.f32.pop %v550
    %vm554 = vweird.f32 %v461
    %v555 = vadd.s32 %v551, 3
    %v556 = vand.u32 %v555, 3
    %vm557 = vcmp.lt.s32.totalorder %v556, 2
    %vm558 = vcmp.eq.s32.totalorder %v556, 0
    %v559 = vxor.u32 %v553, 2147483648
    %v560 = vsel %vm558, %v552, %v559
    %vm561 = vcmp.eq.s32.totalorder %v556, 2
    %v562 = vxor.u32 %v552, 2147483648
    %v563 = vsel %vm561, %v562, %v553
    %v564 = vsel %vm557, %v560, %v563
    %v565 = vsel %vm554, nan, %v564
    %v566 = vand.u32 2147483647, %v461
    %vm567 = vcmp.le.f32.partialorder %v566, 0.7853982
    %vm568 = vcmp.lt.s32.totalorder %v461, 0
    %v569 = vand.u32 %v461, 2139095040
    %v570 = vshrl.u32 %v569, 23
    %v571 = vsub.s32 %v570, 127
    %v572 = vand.u32 2147483647, %v461
    %v573 = vand.u32 %v572, 8388607
    %v574 = vor.u32 %v573, 8388608
    %v575 = vsub.s32 0, %v574
    %v576 = vadd.s32 %v571, 1
    %vm577 = vcmp.gt.s32.totalorder %v576, 0
    %v578 = vsel %vm577, %v576, 0
    %v579 = vshrl.u32 %v578, 5
    %v580 = vand.u32 %v578, 31
    %v581 = vsub.s32 32, %v580
    %v582 = vshrl.u32 683565275, %v581
    %v583 = vshll.u32 683565275, %v580
    %v584 = vshrl.u32 2475754826, %v581
    %v585 = vor.u32 %v583, %v584
    %v586 = vshll.u32 2475754826, %v580
    %v587 = vshrl.u32 2131351028, %v581
    %v588 = vor.u32 %v586, %v587
    %v589 = vshll.u32 2131351028, %v580
    %v590 = vshrl.u32 2102212464, %v581
    %v591 = vor.u32 %v589, %v590
    %v592 = vshll.u32 2102212464, %v580
    %v593 = vshrl.u32 920167782, %v581
    %v594 = vor.u32 %v592, %v593
    %v595 = vshll.u32 920167782, %v580
    %v596 = vshrl.u32 1326507024, %v581
    %v597 = vor.u32 %v595, %v596
    %vm598 = vcmp.lt.s32.totalorder %v579, 1
    %vm599 = vcmp.lt.s32.totalorder %v579, 2
    %vm600 = vcmp.lt.s32.totalorder %v579, 3
    %vm601 = vcmp.lt.s32.totalorder %v579, 4
    %v602 = vsel %vm598, %v582, %v585
    %v603 = vsel %vm601, %v591, 2102212464
    %v604 = vsel %vm600, %v588, %v603
    %v605 = vsel %vm599, %v602, %v604
    %v606 = vsel %vm598, %v585, %v588
    %v607 = vsel %vm601, %v594, 920167782
    %v608 = vsel %vm600, %v591, %v607
    %v609 = vsel %vm599, %v606, %v608
    %v610 = vsel %vm598, %v588, %v591
    %v611 = vsel %vm601, %v597, 1326507024
    %v612 = vsel %vm600, %v594, %v611
    %v613 = vsel %vm599, %v610, %v612
    %v614 = vshll.u32 %v574, 8
    %v615 = vmul.u32.u64.compose %v614, %v613
    %v616 = vextract.low.u32 %v615
    %v617 = vextract.high.u32 %v615
    %v618 = vmul.u32.u64.compose %v614, %v609
    %v619 = vextract.low.u32 %v618
    %v620 = vextract.high.u32 %v618
    %v621 = vmul.u32 %v614, %v605
    %v622 = vadd.s32 %v617, %v619
    %vm623 = vc.u32 %v617, %v619
    %v624 = vadd.s32 %v620, 1
    %v625 = vsel %vm623, %v624, %v620
    %v626 = vadd.s32 %v621, %v625
    %v627 = vadd.s32 %v626, 536870912
    %v628 = vshrl.u32 %v627, 30
    %v629 = vshll.u32 %v628, 30
    %v630 = vsub.s32 %v626, %v629
    %vm631 = vcmp.lt.s32.totalorder %v630, 0
    %v632 = vsub.s32 0, %v630
    %v633 = vsel %vm631, %v632, %v630
    %v634 = vclz %v633
    %v635 = vsub.s32 %v634, 2
    %vm636 = vcmp.gt.s32.totalorder 0, %v635
    %v637 = vsel %vm636, 0, %v635
    %v638 = vsub.s32 32, %v637
    %v639 = vshll.u32 %v630, %v637
    %v640 = vshrl.u32 %v622, %v638
    %v641 = vor.u32 %v639, %v640
    %v642 = vsub.s32 4294967266, %v637
    %v643 = vadd.s32 %v642, 127
    %v644 = vshll.u32 %v643, 23
    %v645 = vor.u32 4788187, %v644
    %v646 = vand.u32 2147483647, %v645
    %v648 = vcvt.s32.f32 %v641
    %v649 = vmul.f32 %v648, %v646
    %v650 = vxor.u32 %v649, 2147483648
    %v651 = vsel %vm568, %v650, %v649
    %v652 = vsub.s32 4, %v628
    %v653 = vsel %vm568, %v652, %v628
    %v654 = vsel %vm567, %v461, %v651
    %v655 = vsel %vm567, 0, %v653
    %v656 = vcosq.f32.pop %v654
    %v657 = vsinq.f32.pop %v654
    %vm658 = vweird.f32 %v461
    %v659 = vand.u32 %v655, 3
    %vm660 = vcmp.lt.s32.totalorder %v659, 2
    %vm661 = vcmp.eq.s32.totalorder %v659, 0
    %v662 = vxor.u32 %v657, 2147483648
    %v663 = vsel %vm661, %v656, %v662
    %vm664 = vcmp.eq.s32.totalorder %v659, 2
    %v665 = vxor.u32 %v656, 2147483648
    %v666 = vsel %vm664, %v665, %v657
    %v667 = vsel %vm660, %v663, %v666
    %v668 = vsel %vm658, nan, %v667
    %v669 = vmul.f32 %v668, 2.0
    %v670 = vmul.f32 %v669, %v565
    %v671 = vstv %s28
    %v672 = vmul.f32 %v671, %v565
    %v673 = vstv %s29
    %v674 = vmul.f32 %v673, %v670
    %v675 = vadd.f32 %v672, %v674
    %v676 = vmul.f32 %v355, %v675
    %v677 = vstv %s30
    %v678 = vmul.f32 %v677, %v565
    %v679 = vstv %s31
    %v680 = vmul.f32 %v679, %v670
    %v681 = vadd.f32 %v678, %v680
    %v682 = vmul.f32 %v460, %v681
    %v683 = vadd.f32 %v676, %v682
    %v684 = vmul.f32 %v145, %v683
    %v685 = vstv %s32
    %v686 = vmul.f32 %v685, %v565
    %v687 = vstv %s33
    %v688 = vmul.f32 %v687, %v670
    %v689 = vadd.f32 %v686, %v688
    %v690 = vmul.f32 %v355, %v689
    %v691 = vstv %s34
    %v692 = vmul.f32 %v691, %v565
    %v693 = vstv %s35
    %v694 = vmul.f32 %v693, %v670
    %v695 = vadd.f32 %v692, %v694
    %v696 = vmul.f32 %v460, %v695
    %v697 = vadd.f32 %v690, %v696
    %v698 = vmul.f32 %v250, %v697
    %v699 = vadd.f32 %v684, %v698
    %700 = vst [vmem:[#allocation7] sm:$0xff] %v699
    // Predicated region
    $region10: #{tpu_custom_call.1} parent=1 // pred_check
      _
    $region11: #{tpu_custom_call.1} parent=1 // pred_check_branch
      %702 = sbr.rel (0) target = $region13
    $region12: #{tpu_custom_call.1} parent=1 // pred_region
      %s704 = ssub.s32 128, 128
      %705 = vsyncadd [#allocation6], %s704
      %s707 = sshll.u32 [#allocation7], 4
      %s708 = int_to_ptr.vmem [resolvable:$true] %s707
      %710 = dma.vmem_to_hbm [thread:$0]  %s708, 128, %s2, [#allocation6]
    $region13: #{tpu_custom_call.1} parent=1 // pred_fallthru
      _
    // Predicated region
    $region14: #{tpu_custom_call.1} parent=1 // pred_check
      _
    $region15: #{tpu_custom_call.1} parent=1 // pred_check_branch
      %712 = sbr.rel (0) target = $region17
    $region16: #{tpu_custom_call.1} parent=1 // pred_region
      %713 = dma.done [#allocation6], 128
    $region17: #{tpu_custom_call.1} parent=1 // pred_fallthru
      _
    %714 = vsyncpa [#allocation5], 1
    %715 = vsyncpa [#allocation6], 1

</llo_original>
